<compile_context>
chip_gen: v5e
topology: v5e:2x2
jax: 0.10.0
libtpu: 0.0.40
codegen_flags: <defaults>
</compile_context>

<pallas_src>
import jax
import jax.numpy as jnp
from jax.experimental import pallas as pl
from jax.experimental.pallas import tpu as pltpu


def _round_up(x, m):
    return ((x + m - 1) // m) * m


# ----------------------------------------------------------------------------
# Kernel: one batch tile, all weights VMEM-resident.
# ----------------------------------------------------------------------------
def critic_kernel(x_ref, w1_ref, b1_ref, w2_ref, b2_ref, wf_ref, bf_ref, out_ref):
    x = x_ref[...]                                            # (TB, K_pad)

    # Fused layer 1: [x_s1 | x_a] = relu([s|a] @ blockdiag(W_s1, W_a1) + [b_s1|b_a1])
    h1 = jnp.dot(x, w1_ref[...], preferred_element_type=jnp.float32)
    h1 = jnp.maximum(h1 + b1_ref[...], 0.0)                   # (TB, H + H/2)

    # Fused layer 2 + concat: [x_s2 | x_a] = relu(h1 @ [[W_s2,0],[0,I]] + [b_s2|0])
    h2 = jnp.dot(h1, w2_ref[...], preferred_element_type=jnp.float32)
    h2 = jnp.maximum(h2 + b2_ref[...], 0.0)                   # (TB, H)

    # Final layer (N=1): VPU multiply + cross-lane (XLU) reduce, tanh on the EUP.
    q = jnp.sum(h2 * wf_ref[...], axis=-1, keepdims=True) + bf_ref[...]
    out_ref[...] = jnp.tanh(q)                                # (TB, 1)


# ----------------------------------------------------------------------------
# Parameter init (matches the PyTorch module: xavier_normal_ weights, bias=0.01)
# ----------------------------------------------------------------------------
def init_critic_params(key, state_size, hidden_size, action_size):
    half = hidden_size // 2

    def xavier(k, fan_in, fan_out):
        std = (2.0 / (fan_in + fan_out)) ** 0.5
        # stored transposed relative to PyTorch: (in, out)
        return std * jax.random.normal(k, (fan_in, fan_out), dtype=jnp.float32)

    k1, k2, k3, k4 = jax.random.split(key, 4)
    return {
        "w_s1": xavier(k1, state_size, hidden_size),
        "b_s1": jnp.full((1, hidden_size), 0.01, jnp.float32),
        "w_s2": xavier(k2, hidden_size, half),
        "b_s2": jnp.full((1, half), 0.01, jnp.float32),
        "w_a1": xavier(k3, action_size, half),
        "b_a1": jnp.full((1, half), 0.01, jnp.float32),
        "w_f": xavier(k4, hidden_size, 1),
        "b_f": jnp.full((1, 1), 0.01, jnp.float32),
    }


def pack_critic_params(params, state_size, hidden_size, action_size):
    """One-time repack into the fused / padded kernel layout."""
    half = hidden_size // 2
    k_in = state_size + action_size
    k_pad = _round_up(k_in, 8)                 # pad K to a sublane multiple once
    c1 = hidden_size + half                    # fused layer-1 output width
    c2 = hidden_size                           # [x_s2 | x_a] width

    # Layer 1: block-diagonal [[W_s1, 0], [0, W_a1]], zero-padded K rows.
    w1 = jnp.zeros((k_pad, c1), jnp.float32)
    w1 = w1.at[:state_size, :hidden_size].set(params["w_s1"])
    w1 = w1.at[state_size:state_size + action_size, hidden_size:].set(params["w_a1"])
    b1 = jnp.concatenate([params["b_s1"], params["b_a1"]], axis=1)        # (1, c1)

    # Layer 2: [[W_s2, 0], [0, I]] -> single matmul yields [x_s2 | x_a].
    w2 = jnp.zeros((c1, c2), jnp.float32)
    w2 = w2.at[:hidden_size, :half].set(params["w_s2"])
    w2 = w2.at[hidden_size:, half:].set(jnp.eye(half, dtype=jnp.float32))
    b2 = jnp.concatenate([params["b_s2"], jnp.zeros((1, half), jnp.float32)], axis=1)

    # Final layer as a row vector for VPU-multiply + lane reduction.
    w_f_row = params["w_f"].T                                             # (1, H)

    return {"w1": w1, "b1": b1, "w2": w2, "b2": b2,
            "w_f": w_f_row, "b_f": params["b_f"], "k_pad": k_pad}


# ----------------------------------------------------------------------------
# Wrapper: batch grid (parallel semantics), weights VMEM-resident across steps.
# ----------------------------------------------------------------------------
def critic_forward(state, action, packed):
    B, S = state.shape
    A = action.shape[1]
    k_pad = packed["k_pad"]

    # Batch tile: 256 rows amortizes per-grid-step overhead; all buffers stay far
    # below VMEM limits on v5e/v6e/v7x (input tile 256*k_pad*4 bytes, weights ~40 KiB).
    TB = min(256, _round_up(B, 8))
    B_pad = _round_up(B, TB)

    # Pack [state | action] once in the wrapper; K already padded to an 8-multiple.
    # TODO(synk): at very large B the pad/concat is one extra HBM pass; could instead
    # feed state/action as separate refs and split the fused matmul into two pushes.
    x = jnp.zeros((B_pad, k_pad), jnp.float32)
    x = x.at[:B, :S].set(state)
    x = x.at[:B, S:S + A].set(action)

    w1, b1, w2, b2, w_f, b_f = (packed["w1"], packed["b1"], packed["w2"],
                                packed["b2"], packed["w_f"], packed["b_f"])

    def resident(arr):
        # full-array block, same block index every grid step -> DMA'd once, reused.
        return pl.BlockSpec(arr.shape, lambda i: (0, 0))

    c1 = w1.shape[1]
    c2 = w2.shape[1]
    flops = 2 * B_pad * (k_pad * c1 + c1 * c2 + c2)
    bytes_accessed = 4 * (B_pad * k_pad + w1.size + b1.size + w2.size + b2.size
                          + w_f.size + b_f.size + B_pad)

    out = pl.pallas_call(
        critic_kernel,
        out_shape=jax.ShapeDtypeStruct((B_pad, 1), jnp.float32),
        grid=(B_pad // TB,),
        in_specs=[
            pl.BlockSpec((TB, k_pad), lambda i: (i, 0)),
            resident(w1), resident(b1),
            resident(w2), resident(b2),
            resident(w_f), resident(b_f),
        ],
        # Output stays (B, 1) to match nn.Linear(hidden, 1); output bytes are B*4 so
        # the narrow (1-lane) writeback is negligible vs. the B*k_pad*4 input read.
        out_specs=pl.BlockSpec((TB, 1), lambda i: (i, 0)),
        compiler_params=pltpu.CompilerParams(
            dimension_semantics=("parallel",)),
        cost_estimate=pl.CostEstimate(flops=flops, transcendentals=B_pad,
                                      bytes_accessed=bytes_accessed),
    )(x, w1, b1, w2, b2, w_f, b_f)
    return out[:B]


if __name__ == "__main__":
    # small shapes consistent with a DDPG critic for a robotic arm
    B, STATE_SIZE, HIDDEN_SIZE, ACTION_SIZE = 8, 24, 64, 6

    key = jax.random.PRNGKey(0)
    k_params, k_state, k_action = jax.random.split(key, 3)

    params = init_critic_params(k_params, STATE_SIZE, HIDDEN_SIZE, ACTION_SIZE)
    packed = pack_critic_params(params, STATE_SIZE, HIDDEN_SIZE, ACTION_SIZE)

    state = jax.random.normal(k_state, (B, STATE_SIZE), dtype=jnp.float32)
    action = jax.random.uniform(k_action, (B, ACTION_SIZE), dtype=jnp.float32,
                                minval=-1.0, maxval=1.0)

    q = critic_forward(state, action, packed)
    jax.block_until_ready(q)

    # pure-JAX reference check with the ORIGINAL (un-fused) parameters
    x_s = jax.nn.relu(state @ params["w_s1"] + params["b_s1"])
    x_s = jax.nn.relu(x_s @ params["w_s2"] + params["b_s2"])
    x_a = jax.nn.relu(action @ params["w_a1"] + params["b_a1"])
    x_cat = jnp.concatenate([x_s, x_a], axis=1)
    ref = jnp.tanh(x_cat @ params["w_f"] + params["b_f"])

    assert q.shape == (B, 1)
    assert jnp.allclose(q, ref, atol=1e-5), "mismatch vs reference"

    print("KERNEL_OK")
</pallas_src>

<mosaic_0001>
module attributes {stable_mosaic.version = 11 : i64} {
  func.func @critic_kernel(%arg0: i32, %arg1: memref<8x32xf32, #tpu.memory_space<vmem>>, %arg2: memref<32x96xf32, #tpu.memory_space<vmem>>, %arg3: memref<1x96xf32, #tpu.memory_space<vmem>>, %arg4: memref<96x64xf32, #tpu.memory_space<vmem>>, %arg5: memref<1x64xf32, #tpu.memory_space<vmem>>, %arg6: memref<1x64xf32, #tpu.memory_space<vmem>>, %arg7: memref<1x1xf32, #tpu.memory_space<vmem>>, %arg8: memref<8x1xf32, #tpu.memory_space<vmem>>) attributes {dimension_semantics = [#tpu.dimension_semantics<parallel>], iteration_bounds = array<i64: 1>, scalar_prefetch = 0 : i64, scratch_operands = 0 : i64, tpu.core_type = #tpu.core_type<tc>, window_params = [{transform_indices = @transform_0, window_bounds = array<i64: 8, 32>}, {pipeline_mode = #tpu.pipeline_mode<synchronous>, transform_indices = @transform_1, window_bounds = array<i64: 32, 96>}, {pipeline_mode = #tpu.pipeline_mode<synchronous>, transform_indices = @transform_2, window_bounds = array<i64: 1, 96>}, {pipeline_mode = #tpu.pipeline_mode<synchronous>, transform_indices = @transform_3, window_bounds = array<i64: 96, 64>}, {pipeline_mode = #tpu.pipeline_mode<synchronous>, transform_indices = @transform_4, window_bounds = array<i64: 1, 64>}, {pipeline_mode = #tpu.pipeline_mode<synchronous>, transform_indices = @transform_5, window_bounds = array<i64: 1, 64>}, {pipeline_mode = #tpu.pipeline_mode<synchronous>, transform_indices = @transform_6, window_bounds = array<i64: 1, 1>}, {transform_indices = @transform_7, window_bounds = array<i64: 8, 1>}]} {
    %c0 = arith.constant 0 : index
    %c0_0 = arith.constant 0 : index
    %0 = vector.load %arg1[%c0, %c0_0] : memref<8x32xf32, #tpu.memory_space<vmem>>, vector<8x32xf32>
    %c0_1 = arith.constant 0 : index
    %c0_2 = arith.constant 0 : index
    %1 = vector.load %arg2[%c0_1, %c0_2] : memref<32x96xf32, #tpu.memory_space<vmem>>, vector<32x96xf32>
    %cst = arith.constant dense<0.000000e+00> : vector<8x96xf32>
    %2 = tpu.matmul %0, %1, %cst {dimension_numbers = #tpu.dot_dimension_numbers<[1], [0], [0], [1], [0, 0, 1, 1], [], []>} : vector<8x32xf32>, vector<32x96xf32>, vector<8x96xf32> -> vector<8x96xf32>
    %c0_3 = arith.constant 0 : index
    %c0_4 = arith.constant 0 : index
    %3 = vector.load %arg3[%c0_3, %c0_4] : memref<1x96xf32, #tpu.memory_space<vmem>>, vector<1x96xf32>
    %4 = vector.broadcast %3 : vector<1x96xf32> to vector<8x96xf32>
    %5 = arith.addf %2, %4 : vector<8x96xf32>
    %cst_5 = arith.constant 0.000000e+00 : f32
    %6 = vector.broadcast %cst_5 : f32 to vector<8x96xf32>
    %7 = arith.maximumf %5, %6 : vector<8x96xf32>
    %c0_6 = arith.constant 0 : index
    %c0_7 = arith.constant 0 : index
    %8 = vector.load %arg4[%c0_6, %c0_7] : memref<96x64xf32, #tpu.memory_space<vmem>>, vector<96x64xf32>
    %cst_8 = arith.constant dense<0.000000e+00> : vector<8x64xf32>
    %9 = tpu.matmul %7, %8, %cst_8 {dimension_numbers = #tpu.dot_dimension_numbers<[1], [0], [0], [1], [0, 0, 1, 1], [], []>} : vector<8x96xf32>, vector<96x64xf32>, vector<8x64xf32> -> vector<8x64xf32>
    %c0_9 = arith.constant 0 : index
    %c0_10 = arith.constant 0 : index
    %10 = vector.load %arg5[%c0_9, %c0_10] : memref<1x64xf32, #tpu.memory_space<vmem>>, vector<1x64xf32>
    %11 = vector.broadcast %10 : vector<1x64xf32> to vector<8x64xf32>
    %12 = arith.addf %9, %11 : vector<8x64xf32>
    %cst_11 = arith.constant 0.000000e+00 : f32
    %13 = vector.broadcast %cst_11 : f32 to vector<8x64xf32>
    %14 = arith.maximumf %12, %13 : vector<8x64xf32>
    %c0_12 = arith.constant 0 : index
    %c0_13 = arith.constant 0 : index
    %15 = vector.load %arg6[%c0_12, %c0_13] : memref<1x64xf32, #tpu.memory_space<vmem>>, vector<1x64xf32>
    %16 = vector.broadcast %15 : vector<1x64xf32> to vector<8x64xf32>
    %17 = arith.mulf %14, %16 : vector<8x64xf32>
    %cst_14 = arith.constant dense<0.000000e+00> : vector<8xf32>
    %18 = vector.multi_reduction <add>, %17, %cst_14 [1] : vector<8x64xf32> to vector<8xf32>
    %19 = vector.shape_cast %18 : vector<8xf32> to vector<8x1xf32>
    %c0_15 = arith.constant 0 : index
    %c0_16 = arith.constant 0 : index
    %20 = vector.load %arg7[%c0_15, %c0_16] : memref<1x1xf32, #tpu.memory_space<vmem>>, vector<1x1xf32>
    %21 = vector.broadcast %20 : vector<1x1xf32> to vector<8x1xf32>
    %22 = arith.addf %19, %21 : vector<8x1xf32>
    %23 = math.tanh %22 : vector<8x1xf32>
    %c0_17 = arith.constant 0 : index
    %c0_18 = arith.constant 0 : index
    %24 = vector.load %arg8[%c0_17, %c0_18] : memref<8x1xf32, #tpu.memory_space<vmem>>, vector<8x1xf32>
    tpu.vector_store %arg8[%c0_17, %c0_18], %23 {strides = array<i32>} : memref<8x1xf32, #tpu.memory_space<vmem>>, vector<8x1xf32>,
    return
  }
  func.func @transform_0(%arg0: i32) -> (i32, i32) {
    %c0_i32 = arith.constant 0 : i32
    %c0_i32_0 = arith.constant 0 : i32
    return %arg0, %c0_i32 : i32, i32
  }
  func.func @transform_1(%arg0: i32) -> (i32, i32) {
    %c0_i32 = arith.constant 0 : i32
    %c0_i32_0 = arith.constant 0 : i32
    %c0_i32_1 = arith.constant 0 : i32
    return %c0_i32, %c0_i32_0 : i32, i32
  }
  func.func @transform_2(%arg0: i32) -> (i32, i32) {
    %c0_i32 = arith.constant 0 : i32
    %c0_i32_0 = arith.constant 0 : i32
    %c0_i32_1 = arith.constant 0 : i32
    return %c0_i32, %c0_i32_0 : i32, i32
  }
  func.func @transform_3(%arg0: i32) -> (i32, i32) {
    %c0_i32 = arith.constant 0 : i32
    %c0_i32_0 = arith.constant 0 : i32
    %c0_i32_1 = arith.constant 0 : i32
    return %c0_i32, %c0_i32_0 : i32, i32
  }
  func.func @transform_4(%arg0: i32) -> (i32, i32) {
    %c0_i32 = arith.constant 0 : i32
    %c0_i32_0 = arith.constant 0 : i32
    %c0_i32_1 = arith.constant 0 : i32
    return %c0_i32, %c0_i32_0 : i32, i32
  }
  func.func @transform_5(%arg0: i32) -> (i32, i32) {
    %c0_i32 = arith.constant 0 : i32
    %c0_i32_0 = arith.constant 0 : i32
    %c0_i32_1 = arith.constant 0 : i32
    return %c0_i32, %c0_i32_0 : i32, i32
  }
  func.func @transform_6(%arg0: i32) -> (i32, i32) {
    %c0_i32 = arith.constant 0 : i32
    %c0_i32_0 = arith.constant 0 : i32
    %c0_i32_1 = arith.constant 0 : i32
    return %c0_i32, %c0_i32_0 : i32, i32
  }
  func.func @transform_7(%arg0: i32) -> (i32, i32) {
    %c0_i32 = arith.constant 0 : i32
    %c0_i32_0 = arith.constant 0 : i32
    return %arg0, %c0_i32 : i32, i32
  }
}

</mosaic_0001>

<llo_original>
// kernel: tpu_custom_call.1
$region0: #{tpu_custom_call.1}
  #allocation0 [shape = 'u32[]', space=smem, size = 0x4, offset = 0x4, fixed_abs, tag = 'smem constant byte address 0x4 - core index']
  #allocation1 [shape = 'u32[72,128]{1,0:T(1,128)}', space=vmem, size = 0x9000, scoped, tag = 'internal scratch']
  #allocation2 [shape = 'f32[1,1]{1,0:T(1,128)S(1)}', space=vmem, size = 0x200, scoped, tag = 'scoped memory for tpu_custom_call.1']
  %s0 = inlined_call_operand.vmem [shape: f32[8,32], index: 0, kind: input, shape index: {}]
  %s1 = inlined_call_operand.vmem [shape: f32[32,96], index: 1, kind: input, shape index: {}]
  %s2 = inlined_call_operand.vmem [shape: f32[1,96], index: 2, kind: input, shape index: {}]
  %s3 = inlined_call_operand.vmem [shape: f32[96,64], index: 3, kind: input, shape index: {}]
  %s4 = inlined_call_operand.vmem [shape: f32[1,64], index: 4, kind: input, shape index: {}]
  %s5 = inlined_call_operand.vmem [shape: f32[1,64], index: 5, kind: input, shape index: {}]
  %s6 = inlined_call_operand.<no memory space> [shape: f32[1,1], index: 6, kind: input, shape index: {}]
  %s7 = inlined_call_operand.vmem [shape: f32[8,1], index: 7, kind: output, shape index: {}]
  %s8 = sld [smem:[#allocation0]]
  $region38: #{tpu_custom_call.1} parent=0
    _
  %s10 = ssub.s32 1, %s8
  %s11 = scalar_select 0, %s10, %s8
  %v12 = vstv %s6
  %13 = vst [vmem:[#allocation2] sm:$0x1] %v12
  // Predicated region
  $region2: #{tpu_custom_call.1} parent=0 // pred_check
    _
  $region3: #{tpu_custom_call.1} parent=0 // pred_check_branch
    %15 = sbr.rel (0) target = $region5
  $region4: #{tpu_custom_call.1} parent=0 // pred_region
    _
  $region5: #{tpu_custom_call.1} parent=0 // pred_fallthru
    _
  // Predicated region
  $region6: #{tpu_custom_call.1} parent=0 // pred_check
    _
  $region7: #{tpu_custom_call.1} parent=0 // pred_check_branch
    %17 = sbr.rel (0) target = $region9
  $region8: #{tpu_custom_call.1} parent=0 // pred_region
    _
  $region9: #{tpu_custom_call.1} parent=0 // pred_fallthru
    _
  // Predicated region
  $region10: #{tpu_custom_call.1} parent=0 // pred_check
    _
  $region11: #{tpu_custom_call.1} parent=0 // pred_check_branch
    %19 = sbr.rel (0) target = $region13
  $region12: #{tpu_custom_call.1} parent=0 // pred_region
    _
  $region13: #{tpu_custom_call.1} parent=0 // pred_fallthru
    _
  // Predicated region
  $region14: #{tpu_custom_call.1} parent=0 // pred_check
    _
  $region15: #{tpu_custom_call.1} parent=0 // pred_check_branch
    %21 = sbr.rel (0) target = $region17
  $region16: #{tpu_custom_call.1} parent=0 // pred_region
    _
  $region17: #{tpu_custom_call.1} parent=0 // pred_fallthru
    _
  // Predicated region
  $region18: #{tpu_custom_call.1} parent=0 // pred_check
    _
  $region19: #{tpu_custom_call.1} parent=0 // pred_check_branch
    %23 = sbr.rel (0) target = $region21
  $region20: #{tpu_custom_call.1} parent=0 // pred_region
    _
  $region21: #{tpu_custom_call.1} parent=0 // pred_fallthru
    _
  // Predicated region
  $region22: #{tpu_custom_call.1} parent=0 // pred_check
    _
  $region23: #{tpu_custom_call.1} parent=0 // pred_check_branch
    %25 = sbr.rel (0) target = $region25
  $region24: #{tpu_custom_call.1} parent=0 // pred_region
    _
  $region25: #{tpu_custom_call.1} parent=0 // pred_fallthru
    _
  // Predicated region
  $region26: #{tpu_custom_call.1} parent=0 // pred_check
    _
  $region27: #{tpu_custom_call.1} parent=0 // pred_check_branch
    %27 = sbr.rel (0) target = $region29
  $region28: #{tpu_custom_call.1} parent=0 // pred_region
    _
  $region29: #{tpu_custom_call.1} parent=0 // pred_fallthru
    _
  %v28 = vld [vmem:[%s0] sm:$0xff]
  %v29 = vld [vmem:[%s1] sm:$0xff]
  %v30 = vld [vmem:[%s1 + $0x8] sm:$0xff]
  %v31 = vld [vmem:[%s1 + $0x10] sm:$0xff]
  %v32 = vld [vmem:[%s1 + $0x18] sm:$0xff]
  %v33 = vld [vmem:[%s2] sm:$0x1]
  %v35 = vperm.slane %v33, 0
  %vm37 = vcmask 261120
  %v39 = vsel %vm37, %v28, 0
  %41 = vmatpush.msra.mxu0 0.0
  %42 = vmatpush.msra.mxu0 0.0
  %43 = vmatpush.msra.mxu0 0.0
  %44 = vmatpush.msra.mxu0 0.0
  %45 = vmatpush.msra.mxu0 0.0
  %46 = vmatpush.msra.mxu0 0.0
  %47 = vmatpush.msra.mxu0 0.0
  %48 = vmatpush.msra.mxu0 0.0
  %49 = vmatpush.msra.mxu0 0.0
  %50 = vmatpush.msra.mxu0 0.0
  %51 = vmatpush.msra.mxu0 0.0
  %52 = vmatpush.msra.mxu0 0.0
  %53 = vmatpush.msra.mxu0 %v32
  %54 = vmatpush.msra.mxu0 %v31
  %55 = vmatpush.msra.mxu0 %v30
  %56 = vmatpush.msra.mxu0 %v29
  %57 = vmatmul.f32.gmra.mxu0 %v39
  %v58 = vpop.f32.mrf.mxu0
  %v59 = vadd.f32 %v35, %v58
  %60 = vdwg.mxu0
  %v61 = vmax.f32 %v59, 0.0
  %v62 = vld [vmem:[%s3] sm:$0xff]
  %v63 = vld [vmem:[%s3 + $0x8] sm:$0xff]
  %v64 = vld [vmem:[%s3 + $0x10] sm:$0xff]
  %v65 = vld [vmem:[%s3 + $0x18] sm:$0xff]
  %v66 = vld [vmem:[%s3 + $0x20] sm:$0xff]
  %v67 = vld [vmem:[%s3 + $0x28] sm:$0xff]
  %v68 = vld [vmem:[%s3 + $0x30] sm:$0xff]
  %v69 = vld [vmem:[%s3 + $0x38] sm:$0xff]
  %v70 = vld [vmem:[%s3 + $0x40] sm:$0xff]
  %v71 = vld [vmem:[%s3 + $0x48] sm:$0xff]
  %v72 = vld [vmem:[%s3 + $0x50] sm:$0xff]
  %v73 = vld [vmem:[%s3 + $0x58] sm:$0xff]
  %v74 = vld [vmem:[%s4] sm:$0x1]
  %v76 = vperm.slane %v74, 0
  %vm78 = vcmask 785408
  %v80 = vsel %vm78, %v61, 0
  %82 = vmatpush.msra.mxu0 0.0
  %83 = vmatpush.msra.mxu0 0.0
  %84 = vmatpush.msra.mxu0 0.0
  %85 = vmatpush.msra.mxu0 0.0
  %86 = vmatpush.msra.mxu0 %v73
  %87 = vmatpush.msra.mxu0 %v72
  %88 = vmatpush.msra.mxu0 %v71
  %89 = vmatpush.msra.mxu0 %v70
  %90 = vmatpush.msra.mxu0 %v69
  %91 = vmatpush.msra.mxu0 %v68
  %92 = vmatpush.msra.mxu0 %v67
  %93 = vmatpush.msra.mxu0 %v66
  %94 = vmatpush.msra.mxu0 %v65
  %95 = vmatpush.msra.mxu0 %v64
  %96 = vmatpush.msra.mxu0 %v63
  %97 = vmatpush.msra.mxu0 %v62
  %98 = vmatmul.f32.gmra.mxu0 %v80
  %v99 = vpop.f32.mrf.mxu0
  %v100 = vadd.f32 %v76, %v99
  %101 = vdwg.mxu0
  %v102 = vmax.f32 %v100, 0.0
  %v103 = vld [vmem:[%s5] sm:$0x1]
  %v105 = vperm.slane %v103, 0
  %v107 = vmul.f32 %v102, %v105
  %vm108 = vcmask 523264
  %v109 = vsel %vm108, %v107, 0.0
  %110 = vadd.xlane.f32.xlu0 %v109
  %v111 = vpop.xlane.xlu0 %110
  %v112 = vld [vmem:[#allocation2] sm:$0x1]
  %v114 = vperm.slane %v112, 0
  %v116 = vadd.f32 %v111, %v114
  %v117 = vtanh.pop %v116
  %vm118 = vcmask 7168
  %119 = vst.msk [vmem:[%s7] sm:$0xff] %vm118, %v117
  // Predicated region
  $region30: #{tpu_custom_call.1} parent=0 // pred_check
    _
  $region31: #{tpu_custom_call.1} parent=0 // pred_check_branch
    %121 = sbr.rel (0) target = $region33
  $region32: #{tpu_custom_call.1} parent=0 // pred_region
    _
  $region33: #{tpu_custom_call.1} parent=0 // pred_fallthru
    _
  // Predicated region
  $region34: #{tpu_custom_call.1} parent=0 // pred_check
    _
  $region35: #{tpu_custom_call.1} parent=0 // pred_check_branch
    %123 = sbr.rel (0) target = $region37
  $region36: #{tpu_custom_call.1} parent=0 // pred_region
    _
  $region37: #{tpu_custom_call.1} parent=0 // pred_fallthru
    _

</llo_original>
